<compile_context>
chip_gen: v7x
topology: tpu7x:2x2x1
jax: 0.10.0
libtpu: 0.0.40
codegen_flags: <defaults>
</compile_context>

<pallas_src>
import jax
import jax.numpy as jnp
from jax.experimental import pallas as pl
from jax.experimental.pallas import tpu as pltpu

NUM_NEURONS = 256
OUT_PAD = 128          # lane-dense padded width of the fc3 output
N_OUT = 3              # module emits 3 action components (xy + rot)


def policy_kernel(x_ref, w1_ref, b1_ref, w2_ref, b2_ref, w3_ref, b3_ref, o_ref):
    # x_ref: [TB, S] bf16; wK_ref: [in, out] bf16; bK_ref: [1, out] f32
    # o_ref: [TB, OUT_PAD] f32 (columns >= N_OUT are zero-padded lanes).
    x = x_ref[...]

    h1 = jnp.dot(x, w1_ref[...], preferred_element_type=jnp.float32)
    h1 = jnp.maximum(h1 + b1_ref[...], 0.0)                      # f32 elementwise

    h2 = jnp.dot(h1.astype(jnp.bfloat16), w2_ref[...],
                 preferred_element_type=jnp.float32)
    h2 = jnp.maximum(h2 + b2_ref[...], 0.0)

    a = jnp.dot(h2.astype(jnp.bfloat16), w3_ref[...],
                preferred_element_type=jnp.float32)
    a = a + b3_ref[...]

    # tanh(action) * 5.0 ; padded lanes are tanh(0)*5 = 0 (discarded in wrapper).
    o_ref[...] = (jnp.tanh(a) * 5.0).astype(o_ref.dtype)


def policy_forward(state, params):
    """Fused PolicyNet forward. state: [B, S] (or [S]); returns [B, 3] (or [3])."""
    w1, b1, w2, b2, w3, b3 = params

    squeeze = state.ndim == 1
    if squeeze:
        state = state[None, :]
    bsz, s_dim = state.shape
    hid = w1.shape[1]

    # --- glue / prep (plain JAX): dtype casts and lane-padding of fc3 -------
    x_bf16 = state.astype(jnp.bfloat16)
    w1b = w1.astype(jnp.bfloat16)
    w2b = w2.astype(jnp.bfloat16)
    # Only the first 3 fc3 columns ever reach the output; pad them to 128 lanes.
    w3p = jnp.zeros((hid, OUT_PAD), jnp.bfloat16).at[:, :N_OUT].set(
        w3[:, :N_OUT].astype(jnp.bfloat16))
    b3p = jnp.zeros((1, OUT_PAD), jnp.float32).at[:, :N_OUT].set(b3[:, :N_OUT])

    # --- batch tiling -------------------------------------------------------
    tb = bsz if bsz <= 128 else 128        # cap tile to avoid vreg spill
    grid = (pl.cdiv(bsz, tb),)
    resident = lambda i: (0, 0)            # weights/biases: one block, VMEM-resident

    out = pl.pallas_call(
        policy_kernel,
        out_shape=jax.ShapeDtypeStruct((bsz, OUT_PAD), jnp.float32),
        grid=grid,
        in_specs=[
            pl.BlockSpec((tb, s_dim), lambda i: (i, 0)),   # x tile
            pl.BlockSpec((s_dim, hid), resident),          # w1
            pl.BlockSpec((1, hid), resident),              # b1
            pl.BlockSpec((hid, hid), resident),            # w2
            pl.BlockSpec((1, hid), resident),              # b2
            pl.BlockSpec((hid, OUT_PAD), resident),        # w3 (padded)
            pl.BlockSpec((1, OUT_PAD), resident),          # b3 (padded)
        ],
        out_specs=pl.BlockSpec((tb, OUT_PAD), lambda i: (i, 0)),
        compiler_params=pltpu.CompilerParams(
            dimension_semantics=("parallel",),
            vmem_limit_bytes=32 * 1024 * 1024,
        ),
    )(x_bf16, w1b, b1, w2b, b2, w3p, b3p)

    act = out[:, :N_OUT]
    if squeeze:
        act = act[0]
    return act


def init_policy_params(key, state_dim, action_dim):
    """PyTorch nn.Linear init; fc3 overridden to uniform(-0.003, 0.003)."""
    keys = jax.random.split(key, 6)

    def linear(kw, kb, fan_in, fan_out, bound=None):
        if bound is None:
            bound = 1.0 / float(fan_in ** 0.5)
        w = jax.random.uniform(kw, (fan_in, fan_out), jnp.float32, -bound, bound)
        b = jax.random.uniform(kb, (1, fan_out), jnp.float32, -bound, bound)
        return w, b

    w1, b1 = linear(keys[0], keys[1], state_dim, NUM_NEURONS)
    w2, b2 = linear(keys[2], keys[3], NUM_NEURONS, NUM_NEURONS)
    w3, b3 = linear(keys[4], keys[5], NUM_NEURONS, action_dim, bound=0.003)
    return (w1, b1, w2, b2, w3, b3)


def policy_reference(state, params):
    """Pure-JAX f32 reference matching the PyTorch forward."""
    w1, b1, w2, b2, w3, b3 = params
    x = jax.nn.relu(state @ w1 + b1)
    x = jax.nn.relu(x @ w2 + b2)
    a = x @ w3 + b3
    action_xy = jnp.tanh(a[:, :2]) * 5.0
    action_rot = jnp.tanh(a[:, 2:3]) * 5.0
    return jnp.concatenate([action_xy, action_rot], axis=1)


if __name__ == "__main__":
    key = jax.random.PRNGKey(0)
    k_params, k_state = jax.random.split(key)

    batch, state_dim, action_dim = 8, 12, 3
    params = init_policy_params(k_params, state_dim, action_dim)
    state = jax.random.normal(k_state, (batch, state_dim), jnp.float32)

    act = policy_forward(state, params)
    act = jax.block_until_ready(act)

    act_ref = policy_reference(state, params)
    assert act.shape == (batch, N_OUT), act.shape
    # bf16 matmul operands (f32 accumulation) vs. full-f32 reference.
    assert jnp.allclose(act, act_ref, atol=1e-2, rtol=1e-2), (
        float(jnp.max(jnp.abs(act - act_ref))))

    print("KERNEL_OK")
</pallas_src>

<mosaic_0001>
module attributes {stable_mosaic.version = 11 : i64} {
  func.func @policy_kernel(%arg0: i32, %arg1: memref<8x12xbf16, #tpu.memory_space<vmem>>, %arg2: memref<12x256xbf16, #tpu.memory_space<vmem>>, %arg3: memref<1x256xf32, #tpu.memory_space<vmem>>, %arg4: memref<256x256xbf16, #tpu.memory_space<vmem>>, %arg5: memref<1x256xf32, #tpu.memory_space<vmem>>, %arg6: memref<256x128xbf16, #tpu.memory_space<vmem>>, %arg7: memref<1x128xf32, #tpu.memory_space<vmem>>, %arg8: memref<8x128xf32, #tpu.memory_space<vmem>>) attributes {dimension_semantics = [#tpu.dimension_semantics<parallel>], iteration_bounds = array<i64: 1>, scalar_prefetch = 0 : i64, scratch_operands = 0 : i64, tpu.core_type = #tpu.core_type<tc>, window_params = [{transform_indices = @transform_0, window_bounds = array<i64: 8, 12>}, {pipeline_mode = #tpu.pipeline_mode<synchronous>, transform_indices = @transform_1, window_bounds = array<i64: 12, 256>}, {pipeline_mode = #tpu.pipeline_mode<synchronous>, transform_indices = @transform_2, window_bounds = array<i64: 1, 256>}, {pipeline_mode = #tpu.pipeline_mode<synchronous>, transform_indices = @transform_3, window_bounds = array<i64: 256, 256>}, {pipeline_mode = #tpu.pipeline_mode<synchronous>, transform_indices = @transform_4, window_bounds = array<i64: 1, 256>}, {pipeline_mode = #tpu.pipeline_mode<synchronous>, transform_indices = @transform_5, window_bounds = array<i64: 256, 128>}, {pipeline_mode = #tpu.pipeline_mode<synchronous>, transform_indices = @transform_6, window_bounds = array<i64: 1, 128>}, {transform_indices = @transform_7, window_bounds = array<i64: 8, 128>}]} {
    %c0 = arith.constant 0 : index
    %c0_0 = arith.constant 0 : index
    %0 = vector.load %arg1[%c0, %c0_0] : memref<8x12xbf16, #tpu.memory_space<vmem>>, vector<8x12xbf16>
    %c0_1 = arith.constant 0 : index
    %c0_2 = arith.constant 0 : index
    %1 = vector.load %arg2[%c0_1, %c0_2] : memref<12x256xbf16, #tpu.memory_space<vmem>>, vector<12x256xbf16>
    %cst = arith.constant dense<0.000000e+00> : vector<8x256xf32>
    %2 = tpu.matmul %0, %1, %cst {dimension_numbers = #tpu.dot_dimension_numbers<[1], [0], [0], [1], [0, 0, 1, 1], [], []>} : vector<8x12xbf16>, vector<12x256xbf16>, vector<8x256xf32> -> vector<8x256xf32>
    %c0_3 = arith.constant 0 : index
    %c0_4 = arith.constant 0 : index
    %3 = vector.load %arg3[%c0_3, %c0_4] : memref<1x256xf32, #tpu.memory_space<vmem>>, vector<1x256xf32>
    %4 = vector.broadcast %3 : vector<1x256xf32> to vector<8x256xf32>
    %5 = arith.addf %2, %4 : vector<8x256xf32>
    %cst_5 = arith.constant 0.000000e+00 : f32
    %6 = vector.broadcast %cst_5 : f32 to vector<8x256xf32>
    %7 = arith.maximumf %5, %6 : vector<8x256xf32>
    %8 = arith.truncf %7 : vector<8x256xf32> to vector<8x256xbf16>
    %c0_6 = arith.constant 0 : index
    %c0_7 = arith.constant 0 : index
    %9 = vector.load %arg4[%c0_6, %c0_7] : memref<256x256xbf16, #tpu.memory_space<vmem>>, vector<256x256xbf16>
    %cst_8 = arith.constant dense<0.000000e+00> : vector<8x256xf32>
    %10 = tpu.matmul %8, %9, %cst_8 {dimension_numbers = #tpu.dot_dimension_numbers<[1], [0], [0], [1], [0, 0, 1, 1], [], []>} : vector<8x256xbf16>, vector<256x256xbf16>, vector<8x256xf32> -> vector<8x256xf32>
    %c0_9 = arith.constant 0 : index
    %c0_10 = arith.constant 0 : index
    %11 = vector.load %arg5[%c0_9, %c0_10] : memref<1x256xf32, #tpu.memory_space<vmem>>, vector<1x256xf32>
    %12 = vector.broadcast %11 : vector<1x256xf32> to vector<8x256xf32>
    %13 = arith.addf %10, %12 : vector<8x256xf32>
    %cst_11 = arith.constant 0.000000e+00 : f32
    %14 = vector.broadcast %cst_11 : f32 to vector<8x256xf32>
    %15 = arith.maximumf %13, %14 : vector<8x256xf32>
    %16 = arith.truncf %15 : vector<8x256xf32> to vector<8x256xbf16>
    %c0_12 = arith.constant 0 : index
    %c0_13 = arith.constant 0 : index
    %17 = vector.load %arg6[%c0_12, %c0_13] : memref<256x128xbf16, #tpu.memory_space<vmem>>, vector<256x128xbf16>
    %cst_14 = arith.constant dense<0.000000e+00> : vector<8x128xf32>
    %18 = tpu.matmul %16, %17, %cst_14 {dimension_numbers = #tpu.dot_dimension_numbers<[1], [0], [0], [1], [0, 0, 1, 1], [], []>} : vector<8x256xbf16>, vector<256x128xbf16>, vector<8x128xf32> -> vector<8x128xf32>
    %c0_15 = arith.constant 0 : index
    %c0_16 = arith.constant 0 : index
    %19 = vector.load %arg7[%c0_15, %c0_16] : memref<1x128xf32, #tpu.memory_space<vmem>>, vector<1x128xf32>
    %20 = vector.broadcast %19 : vector<1x128xf32> to vector<8x128xf32>
    %21 = arith.addf %18, %20 : vector<8x128xf32>
    %22 = math.tanh %21 : vector<8x128xf32>
    %cst_17 = arith.constant 5.000000e+00 : f32
    %23 = vector.broadcast %cst_17 : f32 to vector<8x128xf32>
    %24 = arith.mulf %22, %23 : vector<8x128xf32>
    %c0_18 = arith.constant 0 : index
    %c0_19 = arith.constant 0 : index
    %25 = vector.load %arg8[%c0_18, %c0_19] : memref<8x128xf32, #tpu.memory_space<vmem>>, vector<8x128xf32>
    tpu.vector_store %arg8[%c0_18, %c0_19], %24 {strides = array<i32>} : memref<8x128xf32, #tpu.memory_space<vmem>>, vector<8x128xf32>,
    return
  }
  func.func @transform_0(%arg0: i32) -> (i32, i32) {
    %c0_i32 = arith.constant 0 : i32
    %c0_i32_0 = arith.constant 0 : i32
    return %arg0, %c0_i32 : i32, i32
  }
  func.func @transform_1(%arg0: i32) -> (i32, i32) {
    %c0_i32 = arith.constant 0 : i32
    %c0_i32_0 = arith.constant 0 : i32
    %c0_i32_1 = arith.constant 0 : i32
    return %c0_i32, %c0_i32_0 : i32, i32
  }
  func.func @transform_2(%arg0: i32) -> (i32, i32) {
    %c0_i32 = arith.constant 0 : i32
    %c0_i32_0 = arith.constant 0 : i32
    %c0_i32_1 = arith.constant 0 : i32
    return %c0_i32, %c0_i32_0 : i32, i32
  }
  func.func @transform_3(%arg0: i32) -> (i32, i32) {
    %c0_i32 = arith.constant 0 : i32
    %c0_i32_0 = arith.constant 0 : i32
    %c0_i32_1 = arith.constant 0 : i32
    return %c0_i32, %c0_i32_0 : i32, i32
  }
  func.func @transform_4(%arg0: i32) -> (i32, i32) {
    %c0_i32 = arith.constant 0 : i32
    %c0_i32_0 = arith.constant 0 : i32
    %c0_i32_1 = arith.constant 0 : i32
    return %c0_i32, %c0_i32_0 : i32, i32
  }
  func.func @transform_5(%arg0: i32) -> (i32, i32) {
    %c0_i32 = arith.constant 0 : i32
    %c0_i32_0 = arith.constant 0 : i32
    %c0_i32_1 = arith.constant 0 : i32
    return %c0_i32, %c0_i32_0 : i32, i32
  }
  func.func @transform_6(%arg0: i32) -> (i32, i32) {
    %c0_i32 = arith.constant 0 : i32
    %c0_i32_0 = arith.constant 0 : i32
    %c0_i32_1 = arith.constant 0 : i32
    return %c0_i32, %c0_i32_0 : i32, i32
  }
  func.func @transform_7(%arg0: i32) -> (i32, i32) {
    %c0_i32 = arith.constant 0 : i32
    %c0_i32_0 = arith.constant 0 : i32
    return %arg0, %c0_i32 : i32, i32
  }
}

</mosaic_0001>

<llo_original>
// kernel: tpu_custom_call.1
$region0: #{tpu_custom_call.1}
  #allocation0 [shape = 'u32[]', space=smem, size = 0x4, offset = 0x4, fixed_abs, tag = 'smem constant byte address 0x4 - core index']
  #allocation1 [shape = 'u32[144,128]{1,0:T(1,128)}', space=vmem, size = 0x12000, scoped, tag = 'internal scratch']
  %s0 = inlined_call_operand.hbm [shape: bf16[8,12], index: 0, kind: input, shape index: {}]
  %s1 = inlined_call_operand.hbm [shape: bf16[12,256], index: 1, kind: input, shape index: {}]
  %s2 = inlined_call_operand.vmem [shape: f32[1,256], index: 2, kind: input, shape index: {}]
  %s3 = inlined_call_operand.hbm [shape: bf16[256,256], index: 3, kind: input, shape index: {}]
  %s4 = inlined_call_operand.vmem [shape: f32[1,256], index: 4, kind: input, shape index: {}]
  %s5 = inlined_call_operand.hbm [shape: bf16[256,128], index: 5, kind: input, shape index: {}]
  %s6 = inlined_call_operand.vmem [shape: f32[1,128], index: 6, kind: input, shape index: {}]
  %s7 = inlined_call_operand.hbm [shape: f32[8,128], index: 7, kind: output, shape index: {}]
  %s8 = sld [smem:[#allocation0]]
  $region54: #{tpu_custom_call.1} parent=0
    _
  %s10 = ssub.s32 1, %s8
  %s11 = scalar_select 0, %s10, %s8
  $region1: #{tpu_custom_call.1} parent=0
    #allocation2 [shape = 'u8[2048]{0}', space=vmem, size = 0x800, scoped, tag = 'input window, operand 0, single buffered']
    #allocation3 [shape = 's32[1]{0}', space=sflag, size = 0x4, scoped, tag = 'scoped memory for tpu_custom_call.1']
    #allocation4 [shape = 's32[1]{0}', space=sflag, size = 0x4, scoped, tag = 'scoped memory for tpu_custom_call.1']
    #allocation5 [shape = 'u8[8192]{0}', space=vmem, size = 0x2000, scoped, tag = 'input window, operand 1, single buffered']
    #allocation6 [shape = 's32[1]{0}', space=sflag, size = 0x4, scoped, tag = 'scoped memory for tpu_custom_call.1']
    #allocation7 [shape = 'u8[131072]{0}', space=vmem, size = 0x20000, scoped, tag = 'input window, operand 3, single buffered']
    #allocation8 [shape = 'u8[65536]{0}', space=vmem, size = 0x10000, scoped, tag = 'input window, operand 5, single buffered']
    #allocation9 [shape = 's32[1]{0}', space=sflag, size = 0x4, scoped, tag = 'scoped memory for tpu_custom_call.1']
    #allocation10 [shape = 'u8[4096]{0}', space=vmem, size = 0x1000, scoped, tag = 'output window, operand 0, single buffered']
    %12 = vsyncpa [#allocation3], 0
    %13 = vsyncpa [#allocation6], 0
    %14 = vsyncpa [#allocation9], 0
    %15 = vsyncpa [#allocation4], 0
    // Predicated region
    $region2: #{tpu_custom_call.1} parent=1 // pred_check
      _
    $region3: #{tpu_custom_call.1} parent=1 // pred_check_branch
      %17 = sbr.rel (0) target = $region5
    $region4: #{tpu_custom_call.1} parent=1 // pred_region
      %s19 = ssub.s32 64, 64
      %20 = vsyncadd [#allocation3], %s19
      %s22 = sshll.u32 [#allocation2], 4
      %s23 = int_to_ptr.vmem [resolvable:$true] %s22
      %25 = dma.hbm_to_vmem [thread:$0]  %s0, 64, %s23, [#allocation3]
    $region5: #{tpu_custom_call.1} parent=1 // pred_fallthru
      _
    // Predicated region
    $region6: #{tpu_custom_call.1} parent=1 // pred_check
      _
    $region7: #{tpu_custom_call.1} parent=1 // pred_check_branch
      %27 = sbr.rel (0) target = $region9
    $region8: #{tpu_custom_call.1} parent=1 // pred_region
      %s29 = ssub.s32 256, 256
      %30 = vsyncadd [#allocation6], %s29
      %s31 = sshll.u32 [#allocation5], 4
      %s32 = int_to_ptr.vmem [resolvable:$true] %s31
      %37 = dma.hbm_to_vmem [thread:$0]  %s1, 256, %s32, [#allocation6], 128, 128, 8
    $region9: #{tpu_custom_call.1} parent=1 // pred_fallthru
      _
    // Predicated region
    $region10: #{tpu_custom_call.1} parent=1 // pred_check
      _
    $region11: #{tpu_custom_call.1} parent=1 // pred_check_branch
      %39 = sbr.rel (0) target = $region13
    $region12: #{tpu_custom_call.1} parent=1 // pred_region
      _
    $region13: #{tpu_custom_call.1} parent=1 // pred_fallthru
      _
    // Predicated region
    $region14: #{tpu_custom_call.1} parent=1 // pred_check
      _
    $region15: #{tpu_custom_call.1} parent=1 // pred_check_branch
      %41 = sbr.rel (0) target = $region17
    $region16: #{tpu_custom_call.1} parent=1 // pred_region
      %s43 = ssub.s32 4096, 4096
      %44 = vsyncadd [#allocation6], %s43
      %s45 = sshll.u32 [#allocation7], 4
      %s46 = int_to_ptr.vmem [resolvable:$true] %s45
      %51 = dma.hbm_to_vmem [thread:$0]  %s3, 4096, %s46, [#allocation6], 128, 128, 8
    $region17: #{tpu_custom_call.1} parent=1 // pred_fallthru
      _
    // Predicated region
    $region18: #{tpu_custom_call.1} parent=1 // pred_check
      _
    $region19: #{tpu_custom_call.1} parent=1 // pred_check_branch
      %53 = sbr.rel (0) target = $region21
    $region20: #{tpu_custom_call.1} parent=1 // pred_region
      _
    $region21: #{tpu_custom_call.1} parent=1 // pred_fallthru
      _
    // Predicated region
    $region22: #{tpu_custom_call.1} parent=1 // pred_check
      _
    $region23: #{tpu_custom_call.1} parent=1 // pred_check_branch
      %55 = sbr.rel (0) target = $region25
    $region24: #{tpu_custom_call.1} parent=1 // pred_region
      %s57 = ssub.s32 2048, 2048
      %58 = vsyncadd [#allocation9], %s57
      %s59 = sshll.u32 [#allocation8], 4
      %s60 = int_to_ptr.vmem [resolvable:$true] %s59
      %65 = dma.hbm_to_vmem [thread:$0]  %s5, 2048, %s60, [#allocation9], 64, 64, 4
    $region25: #{tpu_custom_call.1} parent=1 // pred_fallthru
      _
    // Predicated region
    $region26: #{tpu_custom_call.1} parent=1 // pred_check
      _
    $region27: #{tpu_custom_call.1} parent=1 // pred_check_branch
      %67 = sbr.rel (0) target = $region29
    $region28: #{tpu_custom_call.1} parent=1 // pred_region
      _
    $region29: #{tpu_custom_call.1} parent=1 // pred_fallthru
      _
    // Predicated region
    $region30: #{tpu_custom_call.1} parent=1 // pred_check
      _
    $region31: #{tpu_custom_call.1} parent=1 // pred_check_branch
      %69 = sbr.rel (0) target = $region33
    $region32: #{tpu_custom_call.1} parent=1 // pred_region
      %70 = dma.done [#allocation3], 64
    $region33: #{tpu_custom_call.1} parent=1 // pred_fallthru
      _
    // Predicated region
    $region34: #{tpu_custom_call.1} parent=1 // pred_check
      _
    $region35: #{tpu_custom_call.1} parent=1 // pred_check_branch
      %72 = sbr.rel (0) target = $region37
    $region36: #{tpu_custom_call.1} parent=1 // pred_region
      %73 = dma.done [#allocation6], 256
    $region37: #{tpu_custom_call.1} parent=1 // pred_fallthru
      _
    // Predicated region
    $region38: #{tpu_custom_call.1} parent=1 // pred_check
      _
    $region39: #{tpu_custom_call.1} parent=1 // pred_check_branch
      %75 = sbr.rel (0) target = $region41
    $region40: #{tpu_custom_call.1} parent=1 // pred_region
      %76 = dma.done [#allocation6], 4096
    $region41: #{tpu_custom_call.1} parent=1 // pred_fallthru
      _
    // Predicated region
    $region42: #{tpu_custom_call.1} parent=1 // pred_check
      _
    $region43: #{tpu_custom_call.1} parent=1 // pred_check_branch
      %78 = sbr.rel (0) target = $region45
    $region44: #{tpu_custom_call.1} parent=1 // pred_region
      %79 = dma.done [#allocation9], 2048
    $region45: #{tpu_custom_call.1} parent=1 // pred_fallthru
      _
    %v81 = vld [vmem:[#allocation2] sm:$0xf]
    %v82 = vld [vmem:[#allocation5] sm:$0xff]
    %v83 = vld [vmem:[#allocation5 + $0x8] sm:$0x33]
    %v84 = vld [vmem:[%s2] sm:$0x3]
    %v86 = vlaneseq
    %v87 = vshrl.u32 %v86, 7
    %v88 = vsub.s32 0, %v87
    %v89 = vrot.slane %v84, %v88
    %v90 = vlaneseq
    %v91 = vshrl.u32 %v90, 7
    %v92 = vsub.s32 1, %v91
    %v93 = vrot.slane %v84, %v92
    %v98 = vunpack.c.l.b16 %v82
    %v99 = vunpack.c.h.b16 %v82
    %v100 = vunpack.c.l.b16 %v83
    %v101 = vunpack.c.h.b16 %v83
    %v102 = vpack.c.b16 %v100, %v98
    %v103 = vpack.c.b16 %v101, %v99
    %vm104 = vcmask 97280
    %v106 = vsel %vm104, %v81, 0
    %vm108 = vcmask 1045504
    %v110 = vsel %vm108, %v102, 0
    %v113 = vsel %vm108, %v103, 0
    %115 = vmatprep.subr.bf16.mxu0 %v113
    %116 = vmatpush1.bf16.msra.mxu0 %v110
    %117 = vmatprep.subr.bf16.mxu0 0
    %118 = vmatpush1.bf16.msra.mxu0 0
    %119 = vmatprep.subr.bf16.mxu0 0
    %120 = vmatpush1.bf16.msra.mxu0 0
    %121 = vmatprep.subr.bf16.mxu0 0
    %122 = vmatpush1.bf16.msra.mxu0 0
    %123 = vmatprep.subr.bf16.mxu0 0
    %124 = vmatpush1.bf16.msra.mxu0 0
    %125 = vmatprep.subr.bf16.mxu0 0
    %126 = vmatpush1.bf16.msra.mxu0 0
    %127 = vmatprep.subr.bf16.mxu0 0
    %128 = vmatpush1.bf16.msra.mxu0 0
    %129 = vmatprep.subr.bf16.mxu0 0
    %130 = vmatpush1.bf16.msra.mxu0 0
    %131 = vmatprep.subr.bf16.mxu0 0
    %132 = vmatpush1.bf16.msra.mxu0 0
    %133 = vmatprep.subr.bf16.mxu0 0
    %134 = vmatpush1.bf16.msra.mxu0 0
    %135 = vmatprep.subr.bf16.mxu0 0
    %136 = vmatpush1.bf16.msra.mxu0 0
    %137 = vmatprep.subr.bf16.mxu0 0
    %138 = vmatpush1.bf16.msra.mxu0 0
    %139 = vmatprep.subr.bf16.mxu0 0
    %140 = vmatpush1.bf16.msra.mxu0 0
    %141 = vmatprep.subr.bf16.mxu0 0
    %142 = vmatpush1.bf16.msra.mxu0 0
    %143 = vmatprep.subr.bf16.mxu0 0
    %144 = vmatpush1.bf16.msra.mxu0 0
    %145 = vmatprep.subr.bf16.mxu0 0
    %146 = vmatpush1.bf16.msra.mxu0 0
    %147 = vmatprep.mubr.bf16.mxu0 0
    %148 = vmatmul.mubr.bf16.gmra.mrb[0].mxu0 %v106
    %v149 = vpop.f32.mrb[0].mxu0
    %v150 = vadd.f32 %v89, %v149
    %v151 = vpop.f32.mrb[0].mxu0
    %v152 = vadd.f32 %v93, %v151
    %v153 = vpop.f32.mrb[0].mxu0
    %v154 = vpop.f32.mrb[0].mxu0
    %155 = vdwg.mxu0
    %v156 = vmax.f32 %v150, 0.0
    %v157 = vmax.f32 %v152, 0.0
    %v158 = vpack.c.bf16 %v156, %v156
    %v159 = vpack.c.bf16 %v157, %v157
    %v160 = vld [vmem:[#allocation7] sm:$0xff]
    %v161 = vld [vmem:[#allocation7 + $0x8] sm:$0xff]
    %v162 = vld [vmem:[#allocation7 + $0x10] sm:$0xff]
    %v163 = vld [vmem:[#allocation7 + $0x18] sm:$0xff]
    %v164 = vld [vmem:[#allocation7 + $0x20] sm:$0xff]
    %v165 = vld [vmem:[#allocation7 + $0x28] sm:$0xff]
    %v166 = vld [vmem:[#allocation7 + $0x30] sm:$0xff]
    %v167 = vld [vmem:[#allocation7 + $0x38] sm:$0xff]
    %v168 = vld [vmem:[#allocation7 + $0x40] sm:$0xff]
    %v169 = vld [vmem:[#allocation7 + $0x48] sm:$0xff]
    %v170 = vld [vmem:[#allocation7 + $0x50] sm:$0xff]
    %v171 = vld [vmem:[#allocation7 + $0x58] sm:$0xff]
    %v172 = vld [vmem:[#allocation7 + $0x60] sm:$0xff]
    %v173 = vld [vmem:[#allocation7 + $0x68] sm:$0xff]
    %v174 = vld [vmem:[#allocation7 + $0x70] sm:$0xff]
    %v175 = vld [vmem:[#allocation7 + $0x78] sm:$0xff]
    %v176 = vld [vmem:[#allocation7 + $0x80] sm:$0xff]
    %v177 = vld [vmem:[#allocation7 + $0x88] sm:$0xff]
    %v178 = vld [vmem:[#allocation7 + $0x90] sm:$0xff]
    %v179 = vld [vmem:[#allocation7 + $0x98] sm:$0xff]
    %v180 = vld [vmem:[#allocation7 + $0xa0] sm:$0xff]
    %v181 = vld [vmem:[#allocation7 + $0xa8] sm:$0xff]
    %v182 = vld [vmem:[#allocation7 + $0xb0] sm:$0xff]
    %v183 = vld [vmem:[#allocation7 + $0xb8] sm:$0xff]
    %v184 = vld [vmem:[#allocation7 + $0xc0] sm:$0xff]
    %v185 = vld [vmem:[#allocation7 + $0xc8] sm:$0xff]
    %v186 = vld [vmem:[#allocation7 + $0xd0] sm:$0xff]
    %v187 = vld [vmem:[#allocation7 + $0xd8] sm:$0xff]
    %v188 = vld [vmem:[#allocation7 + $0xe0] sm:$0xff]
    %v189 = vld [vmem:[#allocation7 + $0xe8] sm:$0xff]
    %v190 = vld [vmem:[#allocation7 + $0xf0] sm:$0xff]
    %v191 = vld [vmem:[#allocation7 + $0xf8] sm:$0xff]
    %v192 = vld [vmem:[%s4] sm:$0x3]
    %v194 = vlaneseq
    %v195 = vshrl.u32 %v194, 7
    %v196 = vsub.s32 0, %v195
    %v197 = vrot.slane %v192, %v196
    %v198 = vlaneseq
    %v199 = vshrl.u32 %v198, 7
    %v200 = vsub.s32 1, %v199
    %v201 = vrot.slane %v192, %v200
    %v236 = vunpack.c.l.b16 %v160
    %v237 = vunpack.c.h.b16 %v160
    %v238 = vunpack.c.l.b16 %v161
    %v239 = vunpack.c.h.b16 %v161
    %v240 = vunpack.c.l.b16 %v162
    %v241 = vunpack.c.h.b16 %v162
    %v242 = vunpack.c.l.b16 %v163
    %v243 = vunpack.c.h.b16 %v163
    %v244 = vunpack.c.l.b16 %v164
    %v245 = vunpack.c.h.b16 %v164
    %v246 = vunpack.c.l.b16 %v165
    %v247 = vunpack.c.h.b16 %v165
    %v248 = vunpack.c.l.b16 %v166
    %v249 = vunpack.c.h.b16 %v166
    %v250 = vunpack.c.l.b16 %v167
    %v251 = vunpack.c.h.b16 %v167
    %v252 = vunpack.c.l.b16 %v168
    %v253 = vunpack.c.h.b16 %v168
    %v254 = vunpack.c.l.b16 %v169
    %v255 = vunpack.c.h.b16 %v169
    %v256 = vunpack.c.l.b16 %v170
    %v257 = vunpack.c.h.b16 %v170
    %v258 = vunpack.c.l.b16 %v171
    %v259 = vunpack.c.h.b16 %v171
    %v260 = vunpack.c.l.b16 %v172
    %v261 = vunpack.c.h.b16 %v172
    %v262 = vunpack.c.l.b16 %v173
    %v263 = vunpack.c.h.b16 %v173
    %v264 = vunpack.c.l.b16 %v174
    %v265 = vunpack.c.h.b16 %v174
    %v266 = vunpack.c.l.b16 %v175
    %v267 = vunpack.c.h.b16 %v175
    %v268 = vunpack.c.l.b16 %v176
    %v269 = vunpack.c.h.b16 %v176
    %v270 = vunpack.c.l.b16 %v177
    %v271 = vunpack.c.h.b16 %v177
    %v272 = vunpack.c.l.b16 %v178
    %v273 = vunpack.c.h.b16 %v178
    %v274 = vunpack.c.l.b16 %v179
    %v275 = vunpack.c.h.b16 %v179
    %v276 = vunpack.c.l.b16 %v180
    %v277 = vunpack.c.h.b16 %v180
    %v278 = vunpack.c.l.b16 %v181
    %v279 = vunpack.c.h.b16 %v181
    %v280 = vunpack.c.l.b16 %v182
    %v281 = vunpack.c.h.b16 %v182
    %v282 = vunpack.c.l.b16 %v183
    %v283 = vunpack.c.h.b16 %v183
    %v284 = vunpack.c.l.b16 %v184
    %v285 = vunpack.c.h.b16 %v184
    %v286 = vunpack.c.l.b16 %v185
    %v287 = vunpack.c.h.b16 %v185
    %v288 = vunpack.c.l.b16 %v186
    %v289 = vunpack.c.h.b16 %v186
    %v290 = vunpack.c.l.b16 %v187
    %v291 = vunpack.c.h.b16 %v187
    %v292 = vunpack.c.l.b16 %v188
    %v293 = vunpack.c.h.b16 %v188
    %v294 = vunpack.c.l.b16 %v189
    %v295 = vunpack.c.h.b16 %v189
    %v296 = vunpack.c.l.b16 %v190
    %v297 = vunpack.c.h.b16 %v190
    %v298 = vunpack.c.l.b16 %v191
    %v299 = vunpack.c.h.b16 %v191
    %v300 = vpack.c.b16 %v238, %v236
    %v301 = vpack.c.b16 %v239, %v237
    %v302 = vpack.c.b16 %v242, %v240
    %v303 = vpack.c.b16 %v243, %v241
    %v304 = vpack.c.b16 %v246, %v244
    %v305 = vpack.c.b16 %v247, %v245
    %v306 = vpack.c.b16 %v250, %v248
    %v307 = vpack.c.b16 %v251, %v249
    %v308 = vpack.c.b16 %v254, %v252
    %v309 = vpack.c.b16 %v255, %v253
    %v310 = vpack.c.b16 %v258, %v256
    %v311 = vpack.c.b16 %v259, %v257
    %v312 = vpack.c.b16 %v262, %v260
    %v313 = vpack.c.b16 %v263, %v261
    %v314 = vpack.c.b16 %v266, %v264
    %v315 = vpack.c.b16 %v267, %v265
    %v316 = vpack.c.b16 %v270, %v268
    %v317 = vpack.c.b16 %v271, %v269
    %v318 = vpack.c.b16 %v274, %v272
    %v319 = vpack.c.b16 %v275, %v273
    %v320 = vpack.c.b16 %v278, %v276
    %v321 = vpack.c.b16 %v279, %v277
    %v322 = vpack.c.b16 %v282, %v280
    %v323 = vpack.c.b16 %v283, %v281
    %v324 = vpack.c.b16 %v286, %v284
    %v325 = vpack.c.b16 %v287, %v285
    %v326 = vpack.c.b16 %v290, %v288
    %v327 = vpack.c.b16 %v291, %v289
    %v328 = vpack.c.b16 %v294, %v292
    %v329 = vpack.c.b16 %v295, %v293
    %v330 = vpack.c.b16 %v298, %v296
    %v331 = vpack.c.b16 %v299, %v297
    %364 = vmatprep.subr.bf16.mxu0 %v301
    %365 = vmatpush1.bf16.msra.mxu0 %v300
    %366 = vmatprep.subr.bf16.mxu0 %v303
    %367 = vmatpush1.bf16.msra.mxu0 %v302
    %368 = vmatprep.subr.bf16.mxu0 %v305
    %369 = vmatpush1.bf16.msra.mxu0 %v304
    %370 = vmatprep.subr.bf16.mxu0 %v307
    %371 = vmatpush1.bf16.msra.mxu0 %v306
    %372 = vmatprep.subr.bf16.mxu0 %v309
    %373 = vmatpush1.bf16.msra.mxu0 %v308
    %374 = vmatprep.subr.bf16.mxu0 %v311
    %375 = vmatpush1.bf16.msra.mxu0 %v310
    %376 = vmatprep.subr.bf16.mxu0 %v313
    %377 = vmatpush1.bf16.msra.mxu0 %v312
    %378 = vmatprep.subr.bf16.mxu0 %v315
    %379 = vmatpush1.bf16.msra.mxu0 %v314
    %380 = vmatprep.subr.bf16.mxu0 %v317
    %381 = vmatpush1.bf16.msra.mxu0 %v316
    %382 = vmatprep.subr.bf16.mxu0 %v319
    %383 = vmatpush1.bf16.msra.mxu0 %v318
    %384 = vmatprep.subr.bf16.mxu0 %v321
    %385 = vmatpush1.bf16.msra.mxu0 %v320
    %386 = vmatprep.subr.bf16.mxu0 %v323
    %387 = vmatpush1.bf16.msra.mxu0 %v322
    %388 = vmatprep.subr.bf16.mxu0 %v325
    %389 = vmatpush1.bf16.msra.mxu0 %v324
    %390 = vmatprep.subr.bf16.mxu0 %v327
    %391 = vmatpush1.bf16.msra.mxu0 %v326
    %392 = vmatprep.subr.bf16.mxu0 %v329
    %393 = vmatpush1.bf16.msra.mxu0 %v328
    %394 = vmatprep.subr.bf16.mxu0 %v331
    %395 = vmatpush1.bf16.msra.mxu0 %v330
    %396 = vmatprep.mubr.bf16.mxu0 %v159
    %397 = vmatmul.mubr.bf16.gmra.mrb[0].mxu0 %v158
    %v398 = vpop.f32.mrb[0].mxu0
    %v399 = vadd.f32 %v197, %v398
    %v400 = vpop.f32.mrb[0].mxu0
    %v401 = vadd.f32 %v201, %v400
    %v402 = vpop.f32.mrb[0].mxu0
    %v403 = vpop.f32.mrb[0].mxu0
    %404 = vdwg.mxu0
    %v405 = vmax.f32 %v399, 0.0
    %v406 = vmax.f32 %v401, 0.0
    %v407 = vpack.c.bf16 %v405, %v405
    %v408 = vpack.c.bf16 %v406, %v406
    %v409 = vld [vmem:[#allocation8] sm:$0xf]
    %v410 = vld [vmem:[#allocation8 + $0x4] sm:$0xf]
    %v411 = vld [vmem:[#allocation8 + $0x8] sm:$0xf]
    %v412 = vld [vmem:[#allocation8 + $0xc] sm:$0xf]
    %v413 = vld [vmem:[#allocation8 + $0x10] sm:$0xf]
    %v414 = vld [vmem:[#allocation8 + $0x14] sm:$0xf]
    %v415 = vld [vmem:[#allocation8 + $0x18] sm:$0xf]
    %v416 = vld [vmem:[#allocation8 + $0x1c] sm:$0xf]
    %v417 = vld [vmem:[#allocation8 + $0x20] sm:$0xf]
    %v418 = vld [vmem:[#allocation8 + $0x24] sm:$0xf]
    %v419 = vld [vmem:[#allocation8 + $0x28] sm:$0xf]
    %v420 = vld [vmem:[#allocation8 + $0x2c] sm:$0xf]
    %v421 = vld [vmem:[#allocation8 + $0x30] sm:$0xf]
    %v422 = vld [vmem:[#allocation8 + $0x34] sm:$0xf]
    %v423 = vld [vmem:[#allocation8 + $0x38] sm:$0xf]
    %v424 = vld [vmem:[#allocation8 + $0x3c] sm:$0xf]
    %v425 = vld [vmem:[#allocation8 + $0x40] sm:$0xf]
    %v426 = vld [vmem:[#allocation8 + $0x44] sm:$0xf]
    %v427 = vld [vmem:[#allocation8 + $0x48] sm:$0xf]
    %v428 = vld [vmem:[#allocation8 + $0x4c] sm:$0xf]
    %v429 = vld [vmem:[#allocation8 + $0x50] sm:$0xf]
    %v430 = vld [vmem:[#allocation8 + $0x54] sm:$0xf]
    %v431 = vld [vmem:[#allocation8 + $0x58] sm:$0xf]
    %v432 = vld [vmem:[#allocation8 + $0x5c] sm:$0xf]
    %v433 = vld [vmem:[#allocation8 + $0x60] sm:$0xf]
    %v434 = vld [vmem:[#allocation8 + $0x64] sm:$0xf]
    %v435 = vld [vmem:[#allocation8 + $0x68] sm:$0xf]
    %v436 = vld [vmem:[#allocation8 + $0x6c] sm:$0xf]
    %v437 = vld [vmem:[#allocation8 + $0x70] sm:$0xf]
    %v438 = vld [vmem:[#allocation8 + $0x74] sm:$0xf]
    %v439 = vld [vmem:[#allocation8 + $0x78] sm:$0xf]
    %v440 = vld [vmem:[#allocation8 + $0x7c] sm:$0xf]
    %v441 = vld [vmem:[%s6] sm:$0x1]
    %v443 = vlaneseq
    %v444 = vshrl.u32 %v443, 7
    %v445 = vsub.s32 0, %v444
    %v446 = vrot.slane %v441, %v445
    %v480 = vunpack.c.l.b16 %v409
    %v481 = vunpack.c.l.b16 %v410
    %v482 = vunpack.c.l.b16 %v411
    %v483 = vunpack.c.l.b16 %v412
    %v484 = vunpack.c.l.b16 %v413
    %v485 = vunpack.c.l.b16 %v414
    %v486 = vunpack.c.l.b16 %v415
    %v487 = vunpack.c.l.b16 %v416
    %v488 = vunpack.c.l.b16 %v417
    %v489 = vunpack.c.l.b16 %v418
    %v490 = vunpack.c.l.b16 %v419
    %v491 = vunpack.c.l.b16 %v420
    %v492 = vunpack.c.l.b16 %v421
    %v493 = vunpack.c.l.b16 %v422
    %v494 = vunpack.c.l.b16 %v423
    %v495 = vunpack.c.l.b16 %v424
    %v496 = vunpack.c.l.b16 %v425
    %v497 = vunpack.c.l.b16 %v426
    %v498 = vunpack.c.l.b16 %v427
    %v499 = vunpack.c.l.b16 %v428
    %v500 = vunpack.c.l.b16 %v429
    %v501 = vunpack.c.l.b16 %v430
    %v502 = vunpack.c.l.b16 %v431
    %v503 = vunpack.c.l.b16 %v432
    %v504 = vunpack.c.l.b16 %v433
    %v505 = vunpack.c.l.b16 %v434
    %v506 = vunpack.c.l.b16 %v435
    %v507 = vunpack.c.l.b16 %v436
    %v508 = vunpack.c.l.b16 %v437
    %v509 = vunpack.c.l.b16 %v438
    %v510 = vunpack.c.l.b16 %v439
    %v511 = vunpack.c.l.b16 %v440
    %v512 = vpack.c.b16 %v481, %v480
    %v513 = vpack.c.b16 %v483, %v482
    %v514 = vpack.c.b16 %v485, %v484
    %v515 = vpack.c.b16 %v487, %v486
    %v516 = vpack.c.b16 %v489, %v488
    %v517 = vpack.c.b16 %v491, %v490
    %v518 = vpack.c.b16 %v493, %v492
    %v519 = vpack.c.b16 %v495, %v494
    %v520 = vpack.c.b16 %v497, %v496
    %v521 = vpack.c.b16 %v499, %v498
    %v522 = vpack.c.b16 %v501, %v500
    %v523 = vpack.c.b16 %v503, %v502
    %v524 = vpack.c.b16 %v505, %v504
    %v525 = vpack.c.b16 %v507, %v506
    %v526 = vpack.c.b16 %v509, %v508
    %v527 = vpack.c.b16 %v511, %v510
    %544 = vmatprep.subr.bf16.mxu0 0
    %545 = vmatpush1.bf16.msra.mxu0 %v512
    %546 = vmatprep.subr.bf16.mxu0 0
    %547 = vmatpush1.bf16.msra.mxu0 %v513
    %548 = vmatprep.subr.bf16.mxu0 0
    %549 = vmatpush1.bf16.msra.mxu0 %v514
    %550 = vmatprep.subr.bf16.mxu0 0
    %551 = vmatpush1.bf16.msra.mxu0 %v515
    %552 = vmatprep.subr.bf16.mxu0 0
    %553 = vmatpush1.bf16.msra.mxu0 %v516
    %554 = vmatprep.subr.bf16.mxu0 0
    %555 = vmatpush1.bf16.msra.mxu0 %v517
    %556 = vmatprep.subr.bf16.mxu0 0
    %557 = vmatpush1.bf16.msra.mxu0 %v518
    %558 = vmatprep.subr.bf16.mxu0 0
    %559 = vmatpush1.bf16.msra.mxu0 %v519
    %560 = vmatprep.subr.bf16.mxu0 0
    %561 = vmatpush1.bf16.msra.mxu0 %v520
    %562 = vmatprep.subr.bf16.mxu0 0
    %563 = vmatpush1.bf16.msra.mxu0 %v521
    %564 = vmatprep.subr.bf16.mxu0 0
    %565 = vmatpush1.bf16.msra.mxu0 %v522
    %566 = vmatprep.subr.bf16.mxu0 0
    %567 = vmatpush1.bf16.msra.mxu0 %v523
    %568 = vmatprep.subr.bf16.mxu0 0
    %569 = vmatpush1.bf16.msra.mxu0 %v524
    %570 = vmatprep.subr.bf16.mxu0 0
    %571 = vmatpush1.bf16.msra.mxu0 %v525
    %572 = vmatprep.subr.bf16.mxu0 0
    %573 = vmatpush1.bf16.msra.mxu0 %v526
    %574 = vmatprep.subr.bf16.mxu0 0
    %575 = vmatpush1.bf16.msra.mxu0 %v527
    %576 = vmatprep.mubr.bf16.mxu0 %v408
    %577 = vmatmul.mubr.bf16.gmra.mrb[0].mxu0 %v407
    %v578 = vpop.f32.mrb[0].mxu0
    %v579 = vadd.f32 %v446, %v578
    %v580 = vpop.f32.mrb[0].mxu0
    %v581 = vpop.f32.mrb[0].mxu0
    %v582 = vpop.f32.mrb[0].mxu0
    %583 = vdwg.mxu0
    %v584 = vtanh.pop %v579
    %v585 = vmul.f32 %v584, 5.0
    %586 = vst [vmem:[#allocation10] sm:$0xff] %v585
    // Predicated region
    $region46: #{tpu_custom_call.1} parent=1 // pred_check
      _
    $region47: #{tpu_custom_call.1} parent=1 // pred_check_branch
      %588 = sbr.rel (0) target = $region49
    $region48: #{tpu_custom_call.1} parent=1 // pred_region
      %s590 = ssub.s32 128, 128
      %591 = vsyncadd [#allocation4], %s590
      %s593 = sshll.u32 [#allocation10], 4
      %s594 = int_to_ptr.vmem [resolvable:$true] %s593
      %596 = dma.vmem_to_hbm [thread:$0]  %s594, 128, %s7, [#allocation4]
    $region49: #{tpu_custom_call.1} parent=1 // pred_fallthru
      _
    // Predicated region
    $region50: #{tpu_custom_call.1} parent=1 // pred_check
      _
    $region51: #{tpu_custom_call.1} parent=1 // pred_check_branch
      %598 = sbr.rel (0) target = $region53
    $region52: #{tpu_custom_call.1} parent=1 // pred_region
      %599 = dma.done [#allocation4], 128
    $region53: #{tpu_custom_call.1} parent=1 // pred_fallthru
      _
    %600 = vsyncpa [#allocation3], 1
    %601 = vsyncpa [#allocation6], 1
    %602 = vsyncpa [#allocation9], 1
    %603 = vsyncpa [#allocation4], 1

</llo_original>
